<compile_context>
chip_gen: v7x
topology: tpu7x:2x2x1
jax: 0.10.0
libtpu: 0.0.40
codegen_flags: <defaults>
</compile_context>

<pallas_src>
import functools
import math

import jax
import jax.numpy as jnp
from jax import lax
from jax.experimental import pallas as pl
from jax.experimental.pallas import tpu as pltpu

_VMEM_LIMIT = 48 * 1024 * 1024  # > 32 MiB default, < 64 MiB v7x physical


# ----------------------------- in-kernel math ------------------------------

def _layernorm(x, w, b, eps=1e-5):
    mu = jnp.mean(x, axis=-1, keepdims=True)
    var = jnp.mean((x - mu) ** 2, axis=-1, keepdims=True)
    return (x - mu) * lax.rsqrt(var + eps) * w + b


def _gelu_exact(x):
    # matches torch.nn.GELU() (erf formulation)
    return 0.5 * x * (1.0 + lax.erf(x * (1.0 / math.sqrt(2.0))))


def _pick_block(dim, target, mult):
    """Largest block <= target that divides dim and is a multiple of `mult`;
    falls back to the full dim (always legal for BlockSpec)."""
    if dim <= target:
        return dim
    b = (target // mult) * mult
    while b >= mult:
        if dim % b == 0:
            return b
        b -= mult
    return dim


# ------------------------------ Pallas kernels ------------------------------

def qkv_kernel(n_heads, x_ref, ln1w_ref, ln1b_ref, wqkv_ref, bqkv_ref,
               q_ref, k_ref, v_ref):
    """LayerNorm1 + fused QKV projection on a tile of token rows."""
    x = x_ref[...]                                  # (tm, C)
    C = x.shape[-1]
    hd = C // n_heads
    xln = _layernorm(x, ln1w_ref[...], ln1b_ref[...])
    qkv = jnp.dot(xln, wqkv_ref[...],
                  preferred_element_type=jnp.float32) + bqkv_ref[...]
    scale = 1.0 / math.sqrt(hd)                     # fold scale into q (once,
    q_ref[...] = qkv[:, :C] * scale                 # on T*hd not T*T elements)
    k_ref[...] = qkv[:, C:2 * C]
    v_ref[...] = qkv[:, 2 * C:]


def attn_kernel(kv_len, q_ref, k_ref, v_ref, o_ref, m_sc, l_sc, acc_sc):
    """Flash-style causal attention.

    Blocks: q_ref (1, H, tq, hd); k_ref/v_ref (1, H, tk, hd); o_ref (1, H, tq, hd).
    Grid: (batch, q_tile, kv_tile) with the kv axis last/"arbitrary".
    """
    qi = pl.program_id(1)
    ki = pl.program_id(2)
    H, tq, hd = q_ref.shape[1], q_ref.shape[2], q_ref.shape[3]
    tk = k_ref.shape[2]

    @pl.when(ki == 0)
    def _():
        m_sc[...] = jnp.full_like(m_sc, -1e30)      # finite: no NaN on padding
        l_sc[...] = jnp.zeros_like(l_sc)
        acc_sc[...] = jnp.zeros_like(acc_sc)

    # Skip KV tiles that are entirely above the causal diagonal for this q tile.
    @pl.when(ki * tk <= qi * tq + (tq - 1))
    def _():
        q = q_ref[...].reshape(H, tq, hd)           # pre-scaled by 1/sqrt(hd)
        k = k_ref[...].reshape(H, tk, hd)
        v = v_ref[...].reshape(H, tk, hd)
        # one batched contraction over all heads (no per-head Python loop)
        s = jnp.einsum('hqd,hkd->hqk', q, k,
                       preferred_element_type=jnp.float32)      # (H, tq, tk)
        row = qi * tq + lax.broadcasted_iota(jnp.int32, (tq, tk), 0)
        col = ki * tk + lax.broadcasted_iota(jnp.int32, (tq, tk), 1)
        valid = (col <= row) & (col < kv_len)
        s = jnp.where(valid[None], s, -1e30)
        m_prev = m_sc[...]                                      # (H, tq, 1)
        m_new = jnp.maximum(m_prev, jnp.max(s, axis=-1, keepdims=True))
        alpha = jnp.exp(m_prev - m_new)
        p = jnp.exp(s - m_new)
        l_sc[...] = alpha * l_sc[...] + jnp.sum(p, axis=-1, keepdims=True)
        acc_sc[...] = alpha * acc_sc[...] + jnp.einsum(
            'hqk,hkd->hqd', p, v, preferred_element_type=jnp.float32)
        m_sc[...] = m_new

    @pl.when(ki == pl.num_programs(2) - 1)
    def _():
        inv_l = pl.reciprocal(l_sc[...], approx=True)           # EUP slot
        o_ref[...] = (acc_sc[...] * inv_l)[None].astype(o_ref.dtype)


def post_attn_kernel(x_ref, y_ref, wp_ref, bp_ref, ln2w_ref, ln2b_ref,
                     w1_ref, b1_ref, w2_ref, b2_ref, o_ref):
    """attn-out projection + residual, then LayerNorm2 + MLP + residual."""
    x = x_ref[...]                                  # (tm, C)
    y = y_ref[...]                                  # (tm, C)
    x = x + jnp.dot(y, wp_ref[...],
                    preferred_element_type=jnp.float32) + bp_ref[...]
    xln = _layernorm(x, ln2w_ref[...], ln2b_ref[...])
    h = _gelu_exact(jnp.dot(xln, w1_ref[...],
                            preferred_element_type=jnp.float32) + b1_ref[...])
    o_ref[...] = x + jnp.dot(h, w2_ref[...],
                             preferred_element_type=jnp.float32) + b2_ref[...]


def head_kernel(x_ref, lnw_ref, lnb_ref, wh_ref, o_ref, xln_sc):
    """Final LayerNorm (computed once per row tile, cached in VMEM scratch)
    + one lane-dense vocab tile of the (bias-free) head."""
    @pl.when(pl.program_id(1) == 0)                 # vocab axis is innermost
    def _():
        xln_sc[...] = _layernorm(x_ref[...], lnw_ref[...], lnb_ref[...])
    o_ref[...] = jnp.dot(xln_sc[...], wh_ref[...],
                         preferred_element_type=jnp.float32)    # (tm, tv)


# ------------------------------ wrappers ------------------------------------

def run_qkv(x2d, blk, n_heads, row_block):
    N, C = x2d.shape
    tm = _pick_block(N, row_block, 8)
    row = pl.BlockSpec((tm, C), lambda i: (i, 0))
    full = lambda shp: pl.BlockSpec(shp, lambda i: (0, 0))      # VMEM-resident
    return pl.pallas_call(
        functools.partial(qkv_kernel, n_heads),
        out_shape=tuple(jax.ShapeDtypeStruct((N, C), x2d.dtype)
                        for _ in range(3)),
        grid=(pl.cdiv(N, tm),),
        in_specs=[row, full((1, C)), full((1, C)),
                  full((C, 3 * C)), full((1, 3 * C))],
        out_specs=(row, row, row),
        compiler_params=pltpu.CompilerParams(
            dimension_semantics=("parallel",),
            vmem_limit_bytes=_VMEM_LIMIT),
    )(x2d, blk['ln1_w'], blk['ln1_b'], blk['wqkv'], blk['bqkv'])


def run_attention(q2d, k2d, v2d, B, T, n_heads, q_block, kv_block):
    C = q2d.shape[-1]
    hd = C // n_heads
    # Split heads onto a batch axis (head dim stays off the lane axis; hd is
    # the lane axis inside the kernel). Cheap XLA reshuffle outside the kernel.
    def split_heads(t):
        return t.reshape(B, T, n_heads, hd).transpose(0, 2, 1, 3)   # (B,H,T,hd)
    q4, k4, v4 = split_heads(q2d), split_heads(k2d), split_heads(v2d)

    tq = _pick_block(T, q_block, 8)
    tk = _pick_block(T, kv_block, 8)
    q_spec = pl.BlockSpec((1, n_heads, tq, hd), lambda b, qi, ki: (b, 0, qi, 0))
    kv_spec = pl.BlockSpec((1, n_heads, tk, hd), lambda b, qi, ki: (b, 0, ki, 0))

    y4 = pl.pallas_call(
        functools.partial(attn_kernel, T),
        out_shape=jax.ShapeDtypeStruct((B, n_heads, T, hd), q2d.dtype),
        grid=(B, pl.cdiv(T, tq), pl.cdiv(T, tk)),
        in_specs=[q_spec, kv_spec, kv_spec],
        out_specs=q_spec,
        scratch_shapes=[pltpu.VMEM((n_heads, tq, 1), jnp.float32),
                        pltpu.VMEM((n_heads, tq, 1), jnp.float32),
                        pltpu.VMEM((n_heads, tq, hd), jnp.float32)],
        compiler_params=pltpu.CompilerParams(
            dimension_semantics=("parallel", "parallel", "arbitrary"),
            vmem_limit_bytes=_VMEM_LIMIT),
    )(q4, k4, v4)
    # merge heads back: (B, H, T, hd) -> (B*T, C)
    return y4.transpose(0, 2, 1, 3).reshape(B * T, C)


def run_post_attn(x2d, y2d, blk, row_block):
    N, C = x2d.shape
    d_hid = blk['w1'].shape[1]
    tm = _pick_block(N, row_block, 8)
    row = pl.BlockSpec((tm, C), lambda i: (i, 0))
    full = lambda shp: pl.BlockSpec(shp, lambda i: (0, 0))
    return pl.pallas_call(
        post_attn_kernel,
        out_shape=jax.ShapeDtypeStruct((N, C), x2d.dtype),
        grid=(pl.cdiv(N, tm),),
        in_specs=[row, row,
                  full((C, C)), full((1, C)),
                  full((1, C)), full((1, C)),
                  full((C, d_hid)), full((1, d_hid)),
                  full((d_hid, C)), full((1, C))],
        out_specs=row,
        compiler_params=pltpu.CompilerParams(
            dimension_semantics=("parallel",),
            vmem_limit_bytes=_VMEM_LIMIT),
    )(x2d, y2d, blk['wp'], blk['bp'], blk['ln2_w'], blk['ln2_b'],
      blk['w1'], blk['b1'], blk['w2'], blk['b2'])


def run_head(x2d, lnw, lnb, w_head, row_block, vocab_block):
    N, C = x2d.shape
    V = w_head.shape[1]
    tm = _pick_block(N, row_block, 8)
    tv = _pick_block(V, vocab_block, 128)       # lane-dense output tile
    return pl.pallas_call(
        head_kernel,
        out_shape=jax.ShapeDtypeStruct((N, V), x2d.dtype),
        grid=(pl.cdiv(N, tm), pl.cdiv(V, tv)),  # vocab axis innermost so the
        in_specs=[pl.BlockSpec((tm, C), lambda i, j: (i, 0)),  # LN scratch is
                  pl.BlockSpec((1, C), lambda i, j: (0, 0)),   # reused across
                  pl.BlockSpec((1, C), lambda i, j: (0, 0)),   # vocab tiles
                  pl.BlockSpec((C, tv), lambda i, j: (0, j))],
        out_specs=pl.BlockSpec((tm, tv), lambda i, j: (i, j)),
        scratch_shapes=[pltpu.VMEM((tm, C), jnp.float32)],
        compiler_params=pltpu.CompilerParams(
            dimension_semantics=("parallel", "arbitrary"),
            vmem_limit_bytes=_VMEM_LIMIT),
    )(x2d, lnw, lnb, w_head)


def gpt_forward(idx, params, n_heads, *,
                row_block=256, q_block=128, kv_block=128, vocab_block=512):
    """idx: (B, T) int32 token ids -> logits (B, T, vocab)."""
    B, T = idx.shape
    C = params['tok_emb'].shape[1]
    # token/pos embedding gather + add is pure-JAX glue; embd dropout = identity
    x2d = (params['tok_emb'][idx] + params['pos_emb'][:, :T, :]).reshape(B * T, C)
    for blk in params['blocks']:
        q, k, v = run_qkv(x2d, blk, n_heads, row_block)
        y = run_attention(q, k, v, B, T, n_heads, q_block, kv_block)
        x2d = run_post_attn(x2d, y, blk, row_block)
    logits = run_head(x2d, params['lnf_w'], params['lnf_b'], params['head_w'],
                      row_block, vocab_block)
    return logits.reshape(B, T, -1)


# ------------------------- deterministic parameters -------------------------

def init_params(key, vocab_size, block_size, n_layers, d_embd, hidden_mult):
    def normal(k, shape):
        return 0.02 * jax.random.normal(k, shape, dtype=jnp.float32)

    keys = iter(jax.random.split(key, 3 + n_layers * 4))
    params = {
        'tok_emb': normal(next(keys), (vocab_size, d_embd)),
        'pos_emb': normal(next(keys), (1, block_size, d_embd)),
        'lnf_w': jnp.ones((1, d_embd), jnp.float32),
        'lnf_b': jnp.zeros((1, d_embd), jnp.float32),
        # vocab head stored as (C, V) so kernels compute x @ W (laid out once).
        'head_w': normal(next(keys), (d_embd, vocab_size)),
        'blocks': [],
    }
    d_hid = hidden_mult * d_embd
    for _ in range(n_layers):
        params['blocks'].append({
            'ln1_w': jnp.ones((1, d_embd), jnp.float32),
            'ln1_b': jnp.zeros((1, d_embd), jnp.float32),
            'wqkv': normal(next(keys), (d_embd, 3 * d_embd)),   # fused Q|K|V
            'bqkv': jnp.zeros((1, 3 * d_embd), jnp.float32),
            'wp': normal(next(keys), (d_embd, d_embd)),
            'bp': jnp.zeros((1, d_embd), jnp.float32),
            'ln2_w': jnp.ones((1, d_embd), jnp.float32),
            'ln2_b': jnp.zeros((1, d_embd), jnp.float32),
            'w1': normal(next(keys), (d_embd, d_hid)),
            'b1': jnp.zeros((1, d_hid), jnp.float32),
            'w2': normal(next(keys), (d_hid, d_embd)),
            'b2': jnp.zeros((1, d_embd), jnp.float32),
        })
    return params


# ------------------------------ pure-JAX reference ---------------------------

def ref_forward(idx, params, n_heads):
    B, T = idx.shape
    x = params['tok_emb'][idx] + params['pos_emb'][:, :T, :]
    C = x.shape[-1]
    hd = C // n_heads
    for blk in params['blocks']:
        xln = _layernorm(x.reshape(B * T, C), blk['ln1_w'], blk['ln1_b'])
        qkv = xln @ blk['wqkv'] + blk['bqkv']
        q, k, v = jnp.split(qkv, 3, axis=-1)
        def heads(t):
            return t.reshape(B, T, n_heads, hd).transpose(0, 2, 1, 3)
        q, k, v = heads(q), heads(k), heads(v)
        att = jnp.einsum('bhqd,bhkd->bhqk', q, k) / math.sqrt(hd)
        mask = jnp.tril(jnp.ones((T, T), bool))
        att = jnp.where(mask[None, None], att, -jnp.inf)
        att = jax.nn.softmax(att, axis=-1)
        y = jnp.einsum('bhqk,bhkd->bhqd', att, v)
        y = y.transpose(0, 2, 1, 3).reshape(B * T, C)
        x2 = x.reshape(B * T, C) + y @ blk['wp'] + blk['bp']
        xln2 = _layernorm(x2, blk['ln2_w'], blk['ln2_b'])
        h = _gelu_exact(xln2 @ blk['w1'] + blk['b1'])
        x = (x2 + h @ blk['w2'] + blk['b2']).reshape(B, T, C)
    xln = _layernorm(x.reshape(B * T, C), params['lnf_w'], params['lnf_b'])
    return (xln @ params['head_w']).reshape(B, T, -1)


# ---------------------------------- main -------------------------------------

if __name__ == "__main__":
    vocab_size = 256
    block_size = 16
    n_layers = 2
    d_embd = 32
    n_heads = 4
    hidden_mult = 4
    B, T = 2, 16

    key = jax.random.PRNGKey(0)
    pkey, ikey = jax.random.split(key)
    params = init_params(pkey, vocab_size, block_size, n_layers, d_embd,
                         hidden_mult)
    idx = jax.random.randint(ikey, (B, T), 0, vocab_size, dtype=jnp.int32)

    # Small block sizes so these toy shapes actually exercise the multi-tile,
    # pipelined code paths (2 row tiles, 2x2 causal q/kv tiles w/ tile skip,
    # 2 lane-dense vocab tiles with a cached final-LN scratch).
    # Production defaults are 256/128/128/512.
    logits = gpt_forward(idx, params, n_heads,
                         row_block=16, q_block=8, kv_block=8, vocab_block=128)
    logits = jax.block_until_ready(logits)

    ref = jax.block_until_ready(ref_forward(idx, params, n_heads))
    assert logits.shape == (B, T, vocab_size), logits.shape
    max_err = float(jnp.max(jnp.abs(logits - ref)))
    assert jnp.allclose(logits, ref, atol=2e-3, rtol=2e-3), max_err

    print("KERNEL_OK")
</pallas_src>

<mosaic_0001>
module attributes {stable_mosaic.version = 11 : i64} {
  func.func @qkv_kernel(%arg0: i32, %arg1: memref<16x32xf32, #tpu.memory_space<vmem>>, %arg2: memref<1x32xf32, #tpu.memory_space<vmem>>, %arg3: memref<1x32xf32, #tpu.memory_space<vmem>>, %arg4: memref<32x96xf32, #tpu.memory_space<vmem>>, %arg5: memref<1x96xf32, #tpu.memory_space<vmem>>, %arg6: memref<16x32xf32, #tpu.memory_space<vmem>>, %arg7: memref<16x32xf32, #tpu.memory_space<vmem>>, %arg8: memref<16x32xf32, #tpu.memory_space<vmem>>) attributes {dimension_semantics = [#tpu.dimension_semantics<parallel>], iteration_bounds = array<i64: 2>, scalar_prefetch = 0 : i64, scratch_operands = 0 : i64, tpu.core_type = #tpu.core_type<tc>, window_params = [{transform_indices = @transform_0, window_bounds = array<i64: 16, 32>}, {pipeline_mode = #tpu.pipeline_mode<synchronous>, transform_indices = @transform_1, window_bounds = array<i64: 1, 32>}, {pipeline_mode = #tpu.pipeline_mode<synchronous>, transform_indices = @transform_2, window_bounds = array<i64: 1, 32>}, {pipeline_mode = #tpu.pipeline_mode<synchronous>, transform_indices = @transform_3, window_bounds = array<i64: 32, 96>}, {pipeline_mode = #tpu.pipeline_mode<synchronous>, transform_indices = @transform_4, window_bounds = array<i64: 1, 96>}, {transform_indices = @transform_5, window_bounds = array<i64: 16, 32>}, {transform_indices = @transform_6, window_bounds = array<i64: 16, 32>}, {transform_indices = @transform_7, window_bounds = array<i64: 16, 32>}]} {
    %c0 = arith.constant 0 : index
    %c0_0 = arith.constant 0 : index
    %0 = vector.load %arg1[%c0, %c0_0] : memref<16x32xf32, #tpu.memory_space<vmem>>, vector<16x32xf32>
    %c0_1 = arith.constant 0 : index
    %c0_2 = arith.constant 0 : index
    %1 = vector.load %arg2[%c0_1, %c0_2] : memref<1x32xf32, #tpu.memory_space<vmem>>, vector<1x32xf32>
    %c0_3 = arith.constant 0 : index
    %c0_4 = arith.constant 0 : index
    %2 = vector.load %arg3[%c0_3, %c0_4] : memref<1x32xf32, #tpu.memory_space<vmem>>, vector<1x32xf32>
    %cst = arith.constant dense<0.000000e+00> : vector<16xf32>
    %3 = vector.multi_reduction <add>, %0, %cst [1] : vector<16x32xf32> to vector<16xf32>
    %4 = vector.shape_cast %3 : vector<16xf32> to vector<16x1xf32>
    %cst_5 = arith.constant 3.200000e+01 : f32
    %5 = vector.broadcast %cst_5 : f32 to vector<16x1xf32>
    %6 = arith.divf %4, %5 : vector<16x1xf32>
    %7 = vector.broadcast %6 : vector<16x1xf32> to vector<16x32xf32>
    %8 = arith.subf %0, %7 : vector<16x32xf32>
    %9 = arith.mulf %8, %8 : vector<16x32xf32>
    %cst_6 = arith.constant dense<0.000000e+00> : vector<16xf32>
    %10 = vector.multi_reduction <add>, %9, %cst_6 [1] : vector<16x32xf32> to vector<16xf32>
    %11 = vector.shape_cast %10 : vector<16xf32> to vector<16x1xf32>
    %cst_7 = arith.constant 3.200000e+01 : f32
    %12 = vector.broadcast %cst_7 : f32 to vector<16x1xf32>
    %13 = arith.divf %11, %12 : vector<16x1xf32>
    %14 = vector.broadcast %6 : vector<16x1xf32> to vector<16x32xf32>
    %15 = arith.subf %0, %14 : vector<16x32xf32>
    %cst_8 = arith.constant 9.99999974E-6 : f32
    %16 = vector.broadcast %cst_8 : f32 to vector<16x1xf32>
    %17 = arith.addf %13, %16 : vector<16x1xf32>
    %18 = math.rsqrt %17 : vector<16x1xf32>
    %19 = vector.broadcast %18 : vector<16x1xf32> to vector<16x32xf32>
    %20 = arith.mulf %15, %19 : vector<16x32xf32>
    %21 = vector.broadcast %1 : vector<1x32xf32> to vector<16x32xf32>
    %22 = arith.mulf %20, %21 : vector<16x32xf32>
    %23 = vector.broadcast %2 : vector<1x32xf32> to vector<16x32xf32>
    %24 = arith.addf %22, %23 : vector<16x32xf32>
    %c0_9 = arith.constant 0 : index
    %c0_10 = arith.constant 0 : index
    %25 = vector.load %arg4[%c0_9, %c0_10] : memref<32x96xf32, #tpu.memory_space<vmem>>, vector<32x96xf32>
    %cst_11 = arith.constant dense<0.000000e+00> : vector<16x96xf32>
    %26 = tpu.matmul %24, %25, %cst_11 {dimension_numbers = #tpu.dot_dimension_numbers<[1], [0], [0], [1], [0, 0, 1, 1], [], []>} : vector<16x32xf32>, vector<32x96xf32>, vector<16x96xf32> -> vector<16x96xf32>
    %c0_12 = arith.constant 0 : index
    %c0_13 = arith.constant 0 : index
    %27 = vector.load %arg5[%c0_12, %c0_13] : memref<1x96xf32, #tpu.memory_space<vmem>>, vector<1x96xf32>
    %28 = vector.broadcast %27 : vector<1x96xf32> to vector<16x96xf32>
    %29 = arith.addf %26, %28 : vector<16x96xf32>
    %30 = vector.extract_strided_slice %29 {offsets = [0, 0], sizes = [16, 32], strides = [1, 1]} : vector<16x96xf32> to vector<16x32xf32>
    %cst_14 = arith.constant 0.353553385 : f32
    %31 = vector.broadcast %cst_14 : f32 to vector<16x32xf32>
    %32 = arith.mulf %30, %31 : vector<16x32xf32>
    %c0_15 = arith.constant 0 : index
    %c0_16 = arith.constant 0 : index
    %33 = vector.load %arg6[%c0_15, %c0_16] : memref<16x32xf32, #tpu.memory_space<vmem>>, vector<16x32xf32>
    tpu.vector_store %arg6[%c0_15, %c0_16], %32 {strides = array<i32>} : memref<16x32xf32, #tpu.memory_space<vmem>>, vector<16x32xf32>,
    %34 = vector.extract_strided_slice %29 {offsets = [0, 32], sizes = [16, 32], strides = [1, 1]} : vector<16x96xf32> to vector<16x32xf32>
    %c0_17 = arith.constant 0 : index
    %c0_18 = arith.constant 0 : index
    %35 = vector.load %arg7[%c0_17, %c0_18] : memref<16x32xf32, #tpu.memory_space<vmem>>, vector<16x32xf32>
    tpu.vector_store %arg7[%c0_17, %c0_18], %34 {strides = array<i32>} : memref<16x32xf32, #tpu.memory_space<vmem>>, vector<16x32xf32>,
    %36 = vector.extract_strided_slice %29 {offsets = [0, 64], sizes = [16, 32], strides = [1, 1]} : vector<16x96xf32> to vector<16x32xf32>
    %c0_19 = arith.constant 0 : index
    %c0_20 = arith.constant 0 : index
    %37 = vector.load %arg8[%c0_19, %c0_20] : memref<16x32xf32, #tpu.memory_space<vmem>>, vector<16x32xf32>
    tpu.vector_store %arg8[%c0_19, %c0_20], %36 {strides = array<i32>} : memref<16x32xf32, #tpu.memory_space<vmem>>, vector<16x32xf32>,
    return
  }
  func.func @transform_0(%arg0: i32) -> (i32, i32) {
    %c0_i32 = arith.constant 0 : i32
    %c0_i32_0 = arith.constant 0 : i32
    return %arg0, %c0_i32 : i32, i32
  }
  func.func @transform_1(%arg0: i32) -> (i32, i32) {
    %c0_i32 = arith.constant 0 : i32
    %c0_i32_0 = arith.constant 0 : i32
    %c0_i32_1 = arith.constant 0 : i32
    return %c0_i32, %c0_i32_0 : i32, i32
  }
  func.func @transform_2(%arg0: i32) -> (i32, i32) {
    %c0_i32 = arith.constant 0 : i32
    %c0_i32_0 = arith.constant 0 : i32
    %c0_i32_1 = arith.constant 0 : i32
    return %c0_i32, %c0_i32_0 : i32, i32
  }
  func.func @transform_3(%arg0: i32) -> (i32, i32) {
    %c0_i32 = arith.constant 0 : i32
    %c0_i32_0 = arith.constant 0 : i32
    %c0_i32_1 = arith.constant 0 : i32
    return %c0_i32, %c0_i32_0 : i32, i32
  }
  func.func @transform_4(%arg0: i32) -> (i32, i32) {
    %c0_i32 = arith.constant 0 : i32
    %c0_i32_0 = arith.constant 0 : i32
    %c0_i32_1 = arith.constant 0 : i32
    return %c0_i32, %c0_i32_0 : i32, i32
  }
  func.func @transform_5(%arg0: i32) -> (i32, i32) {
    %c0_i32 = arith.constant 0 : i32
    %c0_i32_0 = arith.constant 0 : i32
    return %arg0, %c0_i32 : i32, i32
  }
  func.func @transform_6(%arg0: i32) -> (i32, i32) {
    %c0_i32 = arith.constant 0 : i32
    %c0_i32_0 = arith.constant 0 : i32
    return %arg0, %c0_i32 : i32, i32
  }
  func.func @transform_7(%arg0: i32) -> (i32, i32) {
    %c0_i32 = arith.constant 0 : i32
    %c0_i32_0 = arith.constant 0 : i32
    return %arg0, %c0_i32 : i32, i32
  }
}

</mosaic_0001>

<llo_original>
// kernel: tpu_custom_call.1
$region0: #{tpu_custom_call.1}
  #allocation0 [shape = 'u32[]', space=smem, size = 0x4, offset = 0x4, fixed_abs, tag = 'smem constant byte address 0x4 - core index']
  #allocation1 [shape = 'u32[144,128]{1,0:T(1,128)}', space=vmem, size = 0x12000, scoped, tag = 'internal scratch']
  %s0 = inlined_call_operand.hbm [shape: f32[32,32], index: 0, kind: input, shape index: {}]
  %s1 = inlined_call_operand.vmem [shape: f32[1,32], index: 1, kind: input, shape index: {}]
  %s2 = inlined_call_operand.vmem [shape: f32[1,32], index: 2, kind: input, shape index: {}]
  %s3 = inlined_call_operand.hbm [shape: f32[32,96], index: 3, kind: input, shape index: {}]
  %s4 = inlined_call_operand.vmem [shape: f32[1,96], index: 4, kind: input, shape index: {}]
  %s5 = inlined_call_operand.hbm [shape: f32[32,32], index: 5, kind: output, shape index: {0}]
  %s6 = inlined_call_operand.hbm [shape: f32[32,32], index: 6, kind: output, shape index: {1}]
  %s7 = inlined_call_operand.hbm [shape: f32[32,32], index: 7, kind: output, shape index: {2}]
  %8 = xla_tuple %s5, %s6, %s7
  %s9 = sld [smem:[#allocation0]]
  $region77: #{tpu_custom_call.1} parent=0
    _
  %s11 = ssub.s32 1, %s9
  %s12 = scalar_select 0, %s11, %s9
  $region1: #{tpu_custom_call.1} parent=0
    #allocation2 [shape = 'u8[16384]{0}', space=vmem, size = 0x4000, scoped, tag = 'input window, operand 0']
    #allocation3 [shape = 's32[2]{0}', space=sflag, size = 0x8, scoped, tag = 'scoped memory for tpu_custom_call.1']
    #allocation4 [shape = 's32[2]{0}', space=sflag, size = 0x8, scoped, tag = 'scoped memory for tpu_custom_call.1']
    #allocation5 [shape = 'u8[16384]{0}', space=vmem, size = 0x4000, scoped, tag = 'input window, operand 3, single buffered']
    #allocation6 [shape = 's32[1]{0}', space=sflag, size = 0x4, scoped, tag = 'scoped memory for tpu_custom_call.1']
    #allocation7 [shape = 'u8[16384]{0}', space=vmem, size = 0x4000, scoped, tag = 'output window, operand 0']
    #allocation8 [shape = 'u8[16384]{0}', space=vmem, size = 0x4000, scoped, tag = 'output window, operand 1']
    #allocation9 [shape = 's32[2]{0}', space=sflag, size = 0x8, scoped, tag = 'scoped memory for tpu_custom_call.1']
    #allocation10 [shape = 'u8[16384]{0}', space=vmem, size = 0x4000, scoped, tag = 'output window, operand 2']
    %13 = vsyncpa [#allocation3], 0
    %s14 = scalar_lea.sflag [#allocation3], 1
    %15 = vsyncpa %s14, 0
    %16 = vsyncpa [#allocation6], 0
    %17 = vsyncpa [#allocation4], 0
    %s18 = scalar_lea.sflag [#allocation4], 1
    %19 = vsyncpa %s18, 0
    %20 = vsyncpa [#allocation9], 0
    %s21 = scalar_lea.sflag [#allocation9], 1
    %22 = vsyncpa %s21, 0
    loop: start=0, step=1, limit=4
    $region2: #{tpu_custom_call.1} parent=1 // loop_pre_header
      _
    $region3: #{tpu_custom_call.1} parent=1 // loop_header
      %s24 = sphi 0, %s28
      %p25 = scmp.ge.s32.totalorder %s24, 4
      %s34 = sphi 0, %s36
      %s37 = sphi 0, %s34
      %s38 = sphi 0, %s37
      %s54 = sphi 0, %s38
      %s58 = sphi 0, %s58
      %s60 = sphi 0, %s58
      %s61 = sphi 0, %s60
      %s75 = sphi 0, %s61
      %s79 = sphi 0, %s79
      %s81 = sphi 0, %s79
      %s82 = sphi 0, %s81
      %s96 = sphi 0, %s82
      %s100 = sphi 0, %s100
      %s102 = sphi 0, %s100
      %s103 = sphi 0, %s102
      %s117 = sphi 0, %s103
      %s121 = sphi 0, %s121
      %s123 = sphi 0, %s121
      %s124 = sphi 0, %s123
      %s138 = sphi 0, %s124
      %s144 = sphi 0, %s146
      %s147 = sphi 0, %s144
      %s148 = sphi 0, %s147
      %s164 = sphi 0, %s148
      %s170 = sphi 0, %s172
      %s173 = sphi 0, %s170
      %s174 = sphi 0, %s173
      %s190 = sphi 0, %s174
      %s196 = sphi 0, %s198
      %s199 = sphi 0, %s196
      %s200 = sphi 0, %s199
      %s216 = sphi 0, %s200
    $region4: #{tpu_custom_call.1} parent=1 // loop_header_branch
      %27 = sbr.rel (%p25) target = $region8
    $region5: #{tpu_custom_call.1} parent=1 // loop_body
      %s29 = ssub.s32 %s24, 1
      %s30 = ssub.s32 %s24, 2
      %s31 = sadd.s32 %s24, 1
      %s32 = ssub.s32 %s24, %s31
      %p33 = scmp.eq.s32.totalorder %s32, 0
      %s35 = sadd.s32 %s34, 1
      %s36 = scalar_select %p33, %s34, %s35
      %p39 = pneg %p33
      %p40 = scmp.eq.s32.totalorder %s24, 1
      %p41 = por %p39, %p40
      %p42 = scmp.ne.s32.totalorder %s34, %s37
      %p43 = scmp.eq.s32.totalorder %s24, 0
      %p44 = por %p42, %p43
      %p45 = scmp.ne.s32.totalorder %s34, %s37
      %p46 = scmp.eq.s32.totalorder %s29, 1
      %p47 = por %p45, %p46
      %p48 = scmp.ne.s32.totalorder %s37, %s38
      %p49 = scmp.eq.s32.totalorder %s29, 0
      %p50 = por %p48, %p49
      %p51 = scmp.ne.s32.totalorder %s37, %s38
      %p52 = scmp.eq.s32.totalorder %s30, 1
      %p53 = por %p51, %p52
      %p55 = scmp.ne.s32.totalorder %s38, %s54
      %p56 = scmp.eq.s32.totalorder %s30, 0
      %p57 = por %p55, %p56
      %s59 = sadd.s32 %s58, 1
      %p62 = scmp.eq.s32.totalorder %s24, 1
      %p63 = scmp.ne.s32.totalorder %s58, %s60
      %p64 = scmp.eq.s32.totalorder %s24, 0
      %p65 = por %p63, %p64
      %p66 = scmp.ne.s32.totalorder %s58, %s60
      %p67 = scmp.eq.s32.totalorder %s29, 1
      %p68 = por %p66, %p67
      %p69 = scmp.ne.s32.totalorder %s60, %s61
      %p70 = scmp.eq.s32.totalorder %s29, 0
      %p71 = por %p69, %p70
      %p72 = scmp.ne.s32.totalorder %s60, %s61
      %p73 = scmp.eq.s32.totalorder %s30, 1
      %p74 = por %p72, %p73
      %p76 = scmp.ne.s32.totalorder %s61, %s75
      %p77 = scmp.eq.s32.totalorder %s30, 0
      %p78 = por %p76, %p77
      %s80 = sadd.s32 %s79, 1
      %p83 = scmp.eq.s32.totalorder %s24, 1
      %p84 = scmp.ne.s32.totalorder %s79, %s81
      %p85 = scmp.eq.s32.totalorder %s24, 0
      %p86 = por %p84, %p85
      %p87 = scmp.ne.s32.totalorder %s79, %s81
      %p88 = scmp.eq.s32.totalorder %s29, 1
      %p89 = por %p87, %p88
      %p90 = scmp.ne.s32.totalorder %s81, %s82
      %p91 = scmp.eq.s32.totalorder %s29, 0
      %p92 = por %p90, %p91
      %p93 = scmp.ne.s32.totalorder %s81, %s82
      %p94 = scmp.eq.s32.totalorder %s30, 1
      %p95 = por %p93, %p94
      %p97 = scmp.ne.s32.totalorder %s82, %s96
      %p98 = scmp.eq.s32.totalorder %s30, 0
      %p99 = por %p97, %p98
      %s101 = sadd.s32 %s100, 1
      %p104 = scmp.eq.s32.totalorder %s24, 1
      %p105 = scmp.ne.s32.totalorder %s100, %s102
      %p106 = scmp.eq.s32.totalorder %s24, 0
      %p107 = por %p105, %p106
      %p108 = scmp.ne.s32.totalorder %s100, %s102
      %p109 = scmp.eq.s32.totalorder %s29, 1
      %p110 = por %p108, %p109
      %p111 = scmp.ne.s32.totalorder %s102, %s103
      %p112 = scmp.eq.s32.totalorder %s29, 0
      %p113 = por %p111, %p112
      %p114 = scmp.ne.s32.totalorder %s102, %s103
      %p115 = scmp.eq.s32.totalorder %s30, 1
      %p116 = por %p114, %p115
      %p118 = scmp.ne.s32.totalorder %s103, %s117
      %p119 = scmp.eq.s32.totalorder %s30, 0
      %p120 = por %p118, %p119
      %s122 = sadd.s32 %s121, 1
      %p125 = scmp.eq.s32.totalorder %s24, 1
      %p126 = scmp.ne.s32.totalorder %s121, %s123
      %p127 = scmp.eq.s32.totalorder %s24, 0
      %p128 = por %p126, %p127
      %p129 = scmp.ne.s32.totalorder %s121, %s123
      %p130 = scmp.eq.s32.totalorder %s29, 1
      %p131 = por %p129, %p130
      %p132 = scmp.ne.s32.totalorder %s123, %s124
      %p133 = scmp.eq.s32.totalorder %s29, 0
      %p134 = por %p132, %p133
      %p135 = scmp.ne.s32.totalorder %s123, %s124
      %p136 = scmp.eq.s32.totalorder %s30, 1
      %p137 = por %p135, %p136
      %p139 = scmp.ne.s32.totalorder %s124, %s138
      %p140 = scmp.eq.s32.totalorder %s30, 0
      %p141 = por %p139, %p140
      %s142 = ssub.s32 %s24, %s31
      %p143 = scmp.eq.s32.totalorder %s142, 0
      %s145 = sadd.s32 %s144, 1
      %s146 = scalar_select %p143, %s144, %s145
      %p149 = pneg %p143
      %p150 = scmp.eq.s32.totalorder %s24, 1
      %p151 = por %p149, %p150
      %p152 = scmp.ne.s32.totalorder %s144, %s147
      %p153 = scmp.eq.s32.totalorder %s24, 0
      %p154 = por %p152, %p153
      %p155 = scmp.ne.s32.totalorder %s144, %s147
      %p156 = scmp.eq.s32.totalorder %s29, 1
      %p157 = por %p155, %p156
      %p158 = scmp.ne.s32.totalorder %s147, %s148
      %p159 = scmp.eq.s32.totalorder %s29, 0
      %p160 = por %p158, %p159
      %p161 = scmp.ne.s32.totalorder %s147, %s148
      %p162 = scmp.eq.s32.totalorder %s30, 1
      %p163 = por %p161, %p162
      %p165 = scmp.ne.s32.totalorder %s148, %s164
      %p166 = scmp.eq.s32.totalorder %s30, 0
      %p167 = por %p165, %p166
      %s168 = ssub.s32 %s24, %s31
      %p169 = scmp.eq.s32.totalorder %s168, 0
      %s171 = sadd.s32 %s170, 1
      %s172 = scalar_select %p169, %s170, %s171
      %p175 = pneg %p169
      %p176 = scmp.eq.s32.totalorder %s24, 1
      %p177 = por %p175, %p176
      %p178 = scmp.ne.s32.totalorder %s170, %s173
      %p179 = scmp.eq.s32.totalorder %s24, 0
      %p180 = por %p178, %p179
      %p181 = scmp.ne.s32.totalorder %s170, %s173
      %p182 = scmp.eq.s32.totalorder %s29, 1
      %p183 = por %p181, %p182
      %p184 = scmp.ne.s32.totalorder %s173, %s174
      %p185 = scmp.eq.s32.totalorder %s29, 0
      %p186 = por %p184, %p185
      %p187 = scmp.ne.s32.totalorder %s173, %s174
      %p188 = scmp.eq.s32.totalorder %s30, 1
      %p189 = por %p187, %p188
      %p191 = scmp.ne.s32.totalorder %s174, %s190
      %p192 = scmp.eq.s32.totalorder %s30, 0
      %p193 = por %p191, %p192
      %s194 = ssub.s32 %s24, %s31
      %p195 = scmp.eq.s32.totalorder %s194, 0
      %s197 = sadd.s32 %s196, 1
      %s198 = scalar_select %p195, %s196, %s197
      %p201 = pneg %p195
      %p202 = scmp.eq.s32.totalorder %s24, 1
      %p203 = por %p201, %p202
      %p204 = scmp.ne.s32.totalorder %s196, %s199
      %p205 = scmp.eq.s32.totalorder %s24, 0
      %p206 = por %p204, %p205
      %p207 = scmp.ne.s32.totalorder %s196, %s199
      %p208 = scmp.eq.s32.totalorder %s29, 1
      %p209 = por %p207, %p208
      %p210 = scmp.ne.s32.totalorder %s199, %s200
      %p211 = scmp.eq.s32.totalorder %s29, 0
      %p212 = por %p210, %p211
      %p213 = scmp.ne.s32.totalorder %s199, %s200
      %p214 = scmp.eq.s32.totalorder %s30, 1
      %p215 = por %p213, %p214
      %p217 = scmp.ne.s32.totalorder %s200, %s216
      %p218 = scmp.eq.s32.totalorder %s30, 0
      %p219 = por %p217, %p218
      %p220 = scmp.le.s32.totalorder 1, %s24
      %p221 = scmp.lt.s32.totalorder %s24, 3
      %p222 = pnand %p220, %p221
      %p223 = pneg %p222
      // Predicated region
      $region9: #{tpu_custom_call.1} parent=5 // pred_check
        _
      $region10: #{tpu_custom_call.1} parent=5 // pred_check_branch
        %225 = sbr.rel (%p222) target = $region12
      $region11: #{tpu_custom_call.1} parent=5 // pred_region
        %s226 = ssub.s32 %s24, 1
        // Predicated region
        $region13: #{tpu_custom_call.1} parent=11 // pred_check
          %p227 = pneg %p71
        $region14: #{tpu_custom_call.1} parent=11 // pred_check_branch
          %229 = sbr.rel (%p227) target = $region16
        $region15: #{tpu_custom_call.1} parent=11 // pred_region
          _
        $region16: #{tpu_custom_call.1} parent=11 // pred_fallthru
          _
        // Predicated region
        $region17: #{tpu_custom_call.1} parent=11 // pred_check
          %p230 = pneg %p92
        $region18: #{tpu_custom_call.1} parent=11 // pred_check_branch
          %232 = sbr.rel (%p230) target = $region20
        $region19: #{tpu_custom_call.1} parent=11 // pred_region
          _
        $region20: #{tpu_custom_call.1} parent=11 // pred_fallthru
          _
        // Predicated region
        $region21: #{tpu_custom_call.1} parent=11 // pred_check
          %p233 = pneg %p113
        $region22: #{tpu_custom_call.1} parent=11 // pred_check_branch
          %235 = sbr.rel (%p233) target = $region24
        $region23: #{tpu_custom_call.1} parent=11 // pred_region
          %s237 = ssub.s32 512, 512
          %238 = vsyncadd [#allocation6], %s237
          %s239 = sshll.u32 [#allocation5], 4
          %s240 = int_to_ptr.vmem [resolvable:$true] %s239
          %245 = dma.hbm_to_vmem [thread:$0]  %s3, 512, %s240, [#allocation6], 128, 128, 8
        $region24: #{tpu_custom_call.1} parent=11 // pred_fallthru
          _
        // Predicated region
        $region25: #{tpu_custom_call.1} parent=11 // pred_check
          %p246 = pneg %p134
        $region26: #{tpu_custom_call.1} parent=11 // pred_check_branch
          %248 = sbr.rel (%p246) target = $region28
        $region27: #{tpu_custom_call.1} parent=11 // pred_region
          _
        $region28: #{tpu_custom_call.1} parent=11 // pred_fallthru
          _
      $region12: #{tpu_custom_call.1} parent=5 // pred_fallthru
        _
      %p249 = scmp.lt.s32.totalorder %s24, 2
      // Predicated region
      $region29: #{tpu_custom_call.1} parent=5 // pred_check
        %p250 = pneg %p249
      $region30: #{tpu_custom_call.1} parent=5 // pred_check_branch
        %252 = sbr.rel (%p250) target = $region32
      $region31: #{tpu_custom_call.1} parent=5 // pred_region
        // Predicated region
        $region33: #{tpu_custom_call.1} parent=31 // pred_check
          %p253 = pneg %p44
        $region34: #{tpu_custom_call.1} parent=31 // pred_check_branch
          %255 = sbr.rel (%p253) target = $region36
        $region35: #{tpu_custom_call.1} parent=31 // pred_region
          %s256 = sand.u32 %s34, 1
          %s257 = scalar_lea.sflag [#allocation3], %s256
          %s258 = sand.u32 %s34, 1
          %s259 = smul.addr %s258, 16
          %s260 = scalar_lea.vmem [#allocation2], %s259
          %s261 = smul.u32 2, %s24
          %s263 = ssub.s32 256, 256
          %264 = vsyncadd %s257, %s263
          %s265 = smul.addr %s261, 128
          %s266 = scalar_lea.hbm %s0, %s265
          %s267 = sshll.u32 %s260, 4
          %s268 = int_to_ptr.vmem [resolvable:$true] %s267
          %273 = dma.hbm_to_vmem [thread:$0]  %s266, 256, %s268, %s257, 128, 128, 8
        $region36: #{tpu_custom_call.1} parent=31 // pred_fallthru
          _
      $region32: #{tpu_custom_call.1} parent=5 // pred_fallthru
        _
      %p274 = scmp.le.s32.totalorder 1, %s24
      %p275 = scmp.lt.s32.totalorder %s24, 3
      %p276 = pnand %p274, %p275
      %p277 = pneg %p276
      // Predicated region
      $region37: #{tpu_custom_call.1} parent=5 // pred_check
        _
      $region38: #{tpu_custom_call.1} parent=5 // pred_check_branch
        %279 = sbr.rel (%p276) target = $region40
      $region39: #{tpu_custom_call.1} parent=5 // pred_region
        %s280 = ssub.s32 %s24, 1
        %s281 = sand.u32 %s37, 1
        %s282 = scalar_lea.sflag [#allocation3], %s281
        %s283 = sand.u32 %s37, 1
        %s284 = smul.addr %s283, 16
        %s285 = scalar_lea.vmem [#allocation2], %s284
        // Predicated region
        $region41: #{tpu_custom_call.1} parent=39 // pred_check
          %p286 = pneg %p50
        $region42: #{tpu_custom_call.1} parent=39 // pred_check_branch
          %288 = sbr.rel (%p286) target = $region44
        $region43: #{tpu_custom_call.1} parent=39 // pred_region
          %289 = dma.done %s282, 256
        $region44: #{tpu_custom_call.1} parent=39 // pred_fallthru
          _
        // Predicated region
        $region45: #{tpu_custom_call.1} parent=39 // pred_check
          %p290 = pneg %p113
        $region46: #{tpu_custom_call.1} parent=39 // pred_check_branch
          %292 = sbr.rel (%p290) target = $region48
        $region47: #{tpu_custom_call.1} parent=39 // pred_region
          %293 = dma.done [#allocation6], 512
        $region48: #{tpu_custom_call.1} parent=39 // pred_fallthru
          _
        %s294 = sand.u32 %s37, 1
        %s295 = scalar_lea.sflag [#allocation3], %s294
        %s296 = sand.u32 %s37, 1
        %s297 = smul.addr %s296, 16
        %s298 = scalar_lea.vmem [#allocation2], %s297
        %p299 = pneg %p50
        %p300 = pneg %p47
        %p301 = pneg %p71
        %p302 = pneg %p68
        %p303 = pneg %p92
        %p304 = pneg %p89
        %p305 = pneg %p113
        %p306 = pneg %p110
        %p307 = pneg %p134
        %p308 = pneg %p131
        %p309 = pneg %p160
        %p310 = pneg %p157
        %s311 = sand.u32 %s147, 1
        %s312 = scalar_lea.sflag [#allocation4], %s311
        %s313 = sand.u32 %s147, 1
        %s314 = smul.addr %s313, 16
        %s315 = scalar_lea.vmem [#allocation7], %s314
        %p316 = pneg %p186
        %p317 = pneg %p183
        %s318 = sand.u32 %s29, 1
        %s319 = scalar_lea.sflag [#allocation9], %s318
        %s320 = sand.u32 %s173, 1
        %s321 = smul.addr %s320, 16
        %s322 = scalar_lea.vmem [#allocation8], %s321
        %p323 = pneg %p212
        %p324 = pneg %p209
        %s325 = sand.u32 %s29, 1
        %s326 = scalar_lea.sflag [#allocation9], %s325
        %s327 = sand.u32 %s199, 1
        %s328 = smul.addr %s327, 16
        %s329 = scalar_lea.vmem [#allocation10], %s328
        %s330 = smul.u32 2, %s29
        %s331 = smul.u32 2, %s29
        %s332 = smul.u32 2, %s29
        %s333 = smul.u32 2, %s29
        %v334 = vld [vmem:[%s285] sm:$0xff]
        %v335 = vld [vmem:[%s285 + $0x8] sm:$0xff]
        %v336 = vld [vmem:[%s1] sm:$0x1]
        %v337 = vld [vmem:[%s2] sm:$0x1]
        %vm338 = vcmask 261120
        %v339 = vsel %vm338, %v334, 0.0
        %340 = vadd.xlane.f32.xlu0 %v339
        %v341 = vpop.xlane.xlu0 %340
        %v342 = vsel %vm338, %v335, 0.0
        %343 = vadd.xlane.f32.xlu0 %v342
        %v344 = vpop.xlane.xlu0 %343
        %v345 = vrcp.pop 32.0
        %v346 = vmul.f32 %v341, %v345
        %v347 = vmul.f32 %v344, %v345
        %v348 = vsub.f32 %v334, %v346
        %v349 = vsub.f32 %v335, %v347
        %v350 = vmul.f32 %v348, %v348
        %v351 = vmul.f32 %v349, %v349
        %v352 = vsel %vm338, %v350, 0.0
        %353 = vadd.xlane.f32.xlu0 %v352
        %v354 = vpop.xlane.xlu0 %353
        %v355 = vsel %vm338, %v351, 0.0
        %356 = vadd.xlane.f32.xlu0 %v355
        %v357 = vpop.xlane.xlu0 %356
        %v358 = vmul.f32 %v354, %v345
        %v359 = vmul.f32 %v357, %v345
        %v360 = vadd.f32 %v358, 1e-05
        %v361 = vadd.f32 %v359, 1e-05
        %v362 = vrsqrt.pop %v360
        %v363 = vrsqrt.pop %v361
        %v364 = vmul.f32 %v348, %v362
        %v365 = vmul.f32 %v349, %v363
        %v367 = vlaneseq
        %v368 = vshrl.u32 %v367, 7
        %v369 = vsub.s32 0, %v368
        %v370 = vrot.slane %v336, %v369
        %v372 = vmul.f32 %v364, %v370
        %v373 = vmul.f32 %v365, %v370
        %v375 = vlaneseq
        %v376 = vshrl.u32 %v375, 7
        %v377 = vsub.s32 0, %v376
        %v378 = vrot.slane %v337, %v377
        %v380 = vadd.f32 %v372, %v378
        %v381 = vadd.f32 %v373, %v378
        %v382 = vld [vmem:[#allocation5] sm:$0xff]
        %v383 = vld [vmem:[#allocation5 + $0x8] sm:$0xff]
        %v384 = vld [vmem:[#allocation5 + $0x10] sm:$0xff]
        %v385 = vld [vmem:[#allocation5 + $0x18] sm:$0xff]
        %v386 = vld [vmem:[%s4] sm:$0x1]
        %v388 = vlaneseq
        %v389 = vshrl.u32 %v388, 7
        %v390 = vsub.s32 0, %v389
        %v391 = vrot.slane %v386, %v390
        %v394 = vsel %vm338, %v380, 0
        %v397 = vsel %vm338, %v381, 0
        %399 = vmatprep.subr.mxu0 0.0
        %400 = vmatpush1.msra.mxu0 %v382
        %401 = vmatprep.subr.mxu0 0.0
        %402 = vmatpush1.msra.mxu0 %v383
        %403 = vmatprep.subr.mxu0 0.0
        %404 = vmatpush1.msra.mxu0 %v384
        %405 = vmatprep.subr.mxu0 0.0
        %406 = vmatpush1.msra.mxu0 %v385
        %407 = vmatprep.subr.mxu0 0.0
        %408 = vmatpush1.msra.mxu0 0.0
        %409 = vmatprep.subr.mxu0 0.0
        %410 = vmatpush1.msra.mxu0 0.0
        %411 = vmatprep.subr.mxu0 0.0
        %412 = vmatpush1.msra.mxu0 0.0
        %413 = vmatprep.subr.mxu0 0.0
        %414 = vmatpush1.msra.mxu0 0.0
        %415 = vmatprep.subr.mxu0 0.0
        %416 = vmatpush1.msra.mxu0 0.0
        %417 = vmatprep.subr.mxu0 0.0
        %418 = vmatpush1.msra.mxu0 0.0
        %419 = vmatprep.subr.mxu0 0.0
        %420 = vmatpush1.msra.mxu0 0.0
        %421 = vmatprep.subr.mxu0 0.0
        %422 = vmatpush1.msra.mxu0 0.0
        %423 = vmatprep.subr.mxu0 0.0
        %424 = vmatpush1.msra.mxu0 0.0
        %425 = vmatprep.subr.mxu0 0.0
        %426 = vmatpush1.msra.mxu0 0.0
        %427 = vmatprep.subr.mxu0 0.0
        %428 = vmatpush1.msra.mxu0 0.0
        %429 = vmatprep.subr.mxu0 0.0
        %430 = vmatpush1.msra.mxu0 0.0
        %431 = vmatprep.subr.mxu0 0.0
        %432 = vmatpush1.msra.mxu0 0.0
        %433 = vmatprep.subr.mxu0 0.0
        %434 = vmatpush1.msra.mxu0 0.0
        %435 = vmatprep.subr.mxu0 0.0
        %436 = vmatpush1.msra.mxu0 0.0
        %437 = vmatprep.subr.mxu0 0.0
        %438 = vmatpush1.msra.mxu0 0.0
        %439 = vmatprep.subr.mxu0 0.0
        %440 = vmatpush1.msra.mxu0 0.0
        %441 = vmatprep.subr.mxu0 0.0
        %442 = vmatpush1.msra.mxu0 0.0
        %443 = vmatprep.subr.mxu0 0.0
        %444 = vmatpush1.msra.mxu0 0.0
        %445 = vmatprep.subr.mxu0 0.0
        %446 = vmatpush1.msra.mxu0 0.0
        %447 = vmatprep.subr.mxu0 0.0
        %448 = vmatpush1.msra.mxu0 0.0
        %449 = vmatprep.subr.mxu0 0.0
        %450 = vmatpush1.msra.mxu0 0.0
        %451 = vmatprep.subr.mxu0 0.0
        %452 = vmatpush1.msra.mxu0 0.0
        %453 = vmatprep.subr.mxu0 0.0
        %454 = vmatpush1.msra.mxu0 0.0
        %455 = vmatprep.subr.mxu0 0.0
        %456 = vmatpush1.msra.mxu0 0.0
        %457 = vmatprep.subr.mxu0 0.0
        %458 = vmatpush1.msra.mxu0 0.0
        %459 = vmatprep.subr.mxu0 0.0
        %460 = vmatpush1.msra.mxu0 0.0
        %461 = vmatprep.subr.mxu0 0.0
        %462 = vmatpush1.msra.mxu0 0.0
        %463 = vmatprep.mubr.f32.mxu0 0.0
        %464 = vmatmul.mubr.f32.gmra.mrb[0].mxu0 %v394
        %v465 = vpop.f32.mrb[0].mxu0
        %v466 = vadd.f32 %v391, %v465
        %v467 = vpop.f32.mrb[0].mxu0
        %468 = vmatprep.mubr.f32.mxu0 0.0
        %469 = vmatmul.mubr.f32.gmra.mrb[0].mxu0 %v397
        %v470 = vpop.f32.mrb[0].mxu0
        %v471 = vadd.f32 %v391, %v470
        %v472 = vpop.f32.mrb[0].mxu0
        %473 = vdwg.mxu0
        %v474 = vmul.f32 %v466, 0.35355338
        %v475 = vmul.f32 %v471, 0.35355338
        %476 = vst.msk [vmem:[%s315] sm:$0xff] %vm338, %v474
        %477 = vst.msk [vmem:[%s315 + $0x8] sm:$0xff] %vm338, %v475
        %480 = vrot.lane.b32.xlu0 %v466, 96
        %v481 = vpop.permute.xlu0 %480
        %482 = vrot.lane.b32.xlu0 %v471, 96
        %v483 = vpop.permute.xlu0 %482
        %486 = vst.msk [vmem:[%s322] sm:$0xff] %vm338, %v481
        %487 = vst.msk [vmem:[%s322 + $0x8] sm:$0xff] %vm338, %v483
        %488 = vrot.lane.b32.xlu0 %v466, 64
        %v489 = vpop.permute.xlu0 %488
        %490 = vrot.lane.b32.xlu0 %v471, 64
        %v491 = vpop.permute.xlu0 %490
        %494 = vst.msk [vmem:[%s329] sm:$0xff] %vm338, %v489
        %495 = vst.msk [vmem:[%s329 + $0x8] sm:$0xff] %vm338, %v491
        %s496 = sand.u32 %s147, 1
        %s497 = scalar_lea.sflag [#allocation4], %s496
        %s498 = sand.u32 %s147, 1
        %s499 = smul.addr %s498, 16
        %s500 = scalar_lea.vmem [#allocation7], %s499
        %s501 = sand.u32 %s29, 1
        %s502 = scalar_lea.sflag [#allocation9], %s501
        %s503 = sand.u32 %s173, 1
        %s504 = smul.addr %s503, 16
        %s505 = scalar_lea.vmem [#allocation8], %s504
        %s506 = sand.u32 %s29, 1
        %s507 = scalar_lea.sflag [#allocation9], %s506
        %s508 = sand.u32 %s199, 1
        %s509 = smul.addr %s508, 16
        %s510 = scalar_lea.vmem [#allocation10], %s509
        // Predicated region
        $region49: #{tpu_custom_call.1} parent=39 // pred_check
          %p511 = pneg %p157
        $region50: #{tpu_custom_call.1} parent=39 // pred_check_branch
          %513 = sbr.rel (%p511) target = $region52
        $region51: #{tpu_custom_call.1} parent=39 // pred_region
          %s514 = smul.u32 2, %s29
          %s516 = ssub.s32 256, 256
          %517 = vsyncadd %s497, %s516
          %s518 = smul.addr %s514, 128
          %s519 = scalar_lea.hbm %s5, %s518
          %s520 = sshll.u32 %s500, 4
          %s521 = int_to_ptr.vmem [resolvable:$true] %s520
          %526 = dma.vmem_to_hbm [thread:$0]  %s521, 256, %s519, %s497, 128, 128, 8
        $region52: #{tpu_custom_call.1} parent=39 // pred_fallthru
          _
        // Predicated region
        $region53: #{tpu_custom_call.1} parent=39 // pred_check
          %p527 = pneg %p183
        $region54: #{tpu_custom_call.1} parent=39 // pred_check_branch
          %529 = sbr.rel (%p527) target = $region56
        $region55: #{tpu_custom_call.1} parent=39 // pred_region
          %s530 = smul.u32 2, %s29
          %s532 = ssub.s32 256, 256
          %533 = vsyncadd %s502, %s532
          %s534 = smul.addr %s530, 128
          %s535 = scalar_lea.hbm %s6, %s534
          %s536 = sshll.u32 %s505, 4
          %s537 = int_to_ptr.vmem [resolvable:$true] %s536
          %542 = dma.vmem_to_hbm [thread:$0]  %s537, 256, %s535, %s502, 128, 128, 8
        $region56: #{tpu_custom_call.1} parent=39 // pred_fallthru
          _
        // Predicated region
        $region57: #{tpu_custom_call.1} parent=39 // pred_check
          %p543 = pneg %p209
        $region58: #{tpu_custom_call.1} parent=39 // pred_check_branch
          %545 = sbr.rel (%p543) target = $region60
        $region59: #{tpu_custom_call.1} parent=39 // pred_region
          %s546 = smul.u32 2, %s29
          %s548 = ssub.s32 256, 256
          %549 = vsyncadd %s507, %s548
          %s550 = smul.addr %s546, 128
          %s551 = scalar_lea.hbm %s7, %s550
          %s552 = sshll.u32 %s510, 4
          %s553 = int_to_ptr.vmem [resolvable:$true] %s552
          %558 = dma.vmem_to_hbm [thread:$0]  %s553, 256, %s551, %s507, 128, 128, 8
        $region60: #{tpu_custom_call.1} parent=39 // pred_fallthru
          _
      $region40: #{tpu_custom_call.1} parent=5 // pred_fallthru
        _
      %p559 = scmp.le.s32.totalorder 2, %s24
      // Predicated region
      $region61: #{tpu_custom_call.1} parent=5 // pred_check
        %p560 = pneg %p559
      $region62: #{tpu_custom_call.1} parent=5 // pred_check_branch
        %562 = sbr.rel (%p560) target = $region64
      $region63: #{tpu_custom_call.1} parent=5 // pred_region
        %s563 = ssub.s32 %s24, 2
        // Predicated region
        $region65: #{tpu_custom_call.1} parent=63 // pred_check
          %p564 = pneg %p163
        $region66: #{tpu_custom_call.1} parent=63 // pred_check_branch
          %566 = sbr.rel (%p564) target = $region68
        $region67: #{tpu_custom_call.1} parent=63 // pred_region
          %s567 = sand.u32 %s148, 1
          %s568 = scalar_lea.sflag [#allocation4], %s567
          %s569 = sand.u32 %s148, 1
          %s570 = smul.addr %s569, 16
          %s571 = scalar_lea.vmem [#allocation7], %s570
          %572 = dma.done %s568, 256
        $region68: #{tpu_custom_call.1} parent=63 // pred_fallthru
          _
        // Predicated region
        $region69: #{tpu_custom_call.1} parent=63 // pred_check
          %p573 = pneg %p189
        $region70: #{tpu_custom_call.1} parent=63 // pred_check_branch
          %575 = sbr.rel (%p573) target = $region72
        $region71: #{tpu_custom_call.1} parent=63 // pred_region
          %s576 = sand.u32 %s30, 1
          %s577 = scalar_lea.sflag [#allocation9], %s576
          %s578 = sand.u32 %s174, 1
          %s579 = smul.addr %s578, 16
          %s580 = scalar_lea.vmem [#allocation8], %s579
          %581 = dma.done %s577, 256
        $region72: #{tpu_custom_call.1} parent=63 // pred_fallthru
          _
        // Predicated region
        $region73: #{tpu_custom_call.1} parent=63 // pred_check
          %p582 = pneg %p215
        $region74: #{tpu_custom_call.1} parent=63 // pred_check_branch
          %584 = sbr.rel (%p582) target = $region76
        $region75: #{tpu_custom_call.1} parent=63 // pred_region
          %s585 = sand.u32 %s30, 1
          %s586 = scalar_lea.sflag [#allocation9], %s585
          %s587 = sand.u32 %s200, 1
          %s588 = smul.addr %s587, 16
          %s589 = scalar_lea.vmem [#allocation10], %s588
          %590 = dma.done %s586, 256
        $region76: #{tpu_custom_call.1} parent=63 // pred_fallthru
          _
      $region64: #{tpu_custom_call.1} parent=5 // pred_fallthru
        _
    $region6: #{tpu_custom_call.1} parent=1 // loop_footer
      %s28 = sadd.s32 1, %s24
    $region7: #{tpu_custom_call.1} parent=1 // loop_footer_branch
      %23 = sbr.rel target = $region3
    $region8: #{tpu_custom_call.1} parent=1 // loop_exit
      _
    %591 = vsyncpa [#allocation3], 1
    %s592 = scalar_lea.sflag [#allocation3], 1
    %593 = vsyncpa %s592, 1
    %594 = vsyncpa [#allocation6], 1
    %595 = vsyncpa [#allocation4], 1
    %s596 = scalar_lea.sflag [#allocation4], 1
    %597 = vsyncpa %s596, 1
    %598 = vsyncpa [#allocation9], 1
    %s599 = scalar_lea.sflag [#allocation9], 1
    %600 = vsyncpa %s599, 1

</llo_original>
